<compile_context>
chip_gen: v6e
topology: v6e:2x2x1
jax: 0.10.0
libtpu: 0.0.40
codegen_flags: <defaults>
</compile_context>

<pallas_src>
import functools

import jax
import jax.numpy as jnp
from jax.experimental import pallas as pl
from jax.experimental.pallas import tpu as pltpu

_LANE = 128
_SUBLANE = 8
_VREG = _SUBLANE * _LANE                 # 1024 elements per f32 vreg
_MAX_TILE_R = 2048                       # (2048,128) f32 = 1 MiB per input per step
_SMALL_N_THRESHOLD = 512 * 1024          # below this, fused XLA beats a kernel launch
_NUM_CORES = 2                           # leading "parallel" axis (v7x megacore; serial on v5e/v6e)


def _cdiv(a, b):
    return -(-a // b)


def _round_up(x, k):
    return _cdiv(x, k) * k


def _contrastive_loss_kernel(n_ref, d_ref, f_ref, o_ref, *, m, tile_r, bpc):
    """Accumulate this core's un-normalized loss sum into its (8,128) output block."""
    c = pl.program_id(0)          # core split   ("parallel")
    i = pl.program_id(1)          # block walk   ("arbitrary", accumulator axis)

    @pl.when(i == 0)
    def _():
        o_ref[...] = jnp.zeros_like(o_ref)

    # Upcast in-kernel: bf16 distances / int8 / bool flags keep HBM traffic narrow.
    d = d_ref[...].astype(jnp.float32)
    f = f_ref[...].astype(jnp.float32)
    d2 = d * d
    h = jnp.maximum(m - d, 0.0)                       # clamp(m - d, min=0)
    # (1-f)*d^2 + f*h^2  ==  d^2 + f*(h^2 - d^2)  (2 fewer VALU ops / element)
    contrib = d2 + f * (h * h - d2)

    def fold(x):
        # (tile_r,128) -> (tile_r//8, 8, 128) is vreg-tile aligned (free relayout);
        # the axis-0 sum is plain vreg adds — no full-tile VMEM read-modify-write.
        return jnp.sum(x.reshape(-1, _SUBLANE, _LANE), axis=0)

    n_valid = n_ref[0]                                # true element count (SMEM)
    block_id = c * bpc + i                            # logical (un-clamped) block id
    elem_off = block_id * (tile_r * _LANE)            # flat offset of this block
    block_end = elem_off + tile_r * _LANE

    @pl.when(block_end <= n_valid)
    def _():
        # Steady state: block fully in-bounds, no masking needed.
        o_ref[...] += fold(contrib)

    @pl.when(block_end > n_valid)
    def _():
        # Ragged last block / dummy block of the core split: mask by flat index,
        # so garbage in the partially-DMA'd region (and any padding) contributes 0.
        rows = jax.lax.broadcasted_iota(jnp.int32, (tile_r, _LANE), 0)
        lanes = jax.lax.broadcasted_iota(jnp.int32, (tile_r, _LANE), 1)
        flat_idx = elem_off + rows * _LANE + lanes
        o_ref[...] += fold(jnp.where(flat_idx < n_valid, contrib, 0.0))


def contrastive_loss(euc_dist, flag, m=2.0, *, use_pallas=None):
    """euc_dist, flag: same shape (any rank). Returns scalar f32 loss."""
    assert euc_dist.shape == flag.shape
    n = euc_dist.size

    if use_pallas is None:
        use_pallas = n >= _SMALL_N_THRESHOLD

    if not use_pallas:
        # Small inputs: let XLA fuse the elementwise + reduce (kernel launch
        # overhead would dominate).
        d = euc_dist.astype(jnp.float32)
        f = flag.astype(jnp.float32)
        return jnp.mean(
            (1.0 - f) * d * d + f * jnp.square(jnp.maximum(m - d, 0.0)))

    d_flat = euc_dist.reshape(-1)
    f_flat = flag.reshape(-1)

    # Lane-dense slab. Zero-copy when n is already a multiple of 8*128 = 1024;
    # otherwise pad only to the next 1024 boundary. Pad *values* are irrelevant
    # (the kernel masks by true element index).
    n_pad = _round_up(n, _VREG)
    if n_pad != n:
        # TODO(synk): jnp.pad is an O(n) HBM copy; callers with 1024-aligned
        # sizes skip this branch entirely.
        d_flat = jnp.pad(d_flat, (0, n_pad - n))
        f_flat = jnp.pad(f_flat, (0, n_pad - n))
    rows = n_pad // _LANE                              # always a multiple of 8

    tile_r = min(_MAX_TILE_R, rows)                    # multiple of 8
    nblocks = _cdiv(rows, tile_r)
    bpc = _cdiv(nblocks, _NUM_CORES)                   # blocks per core
    last_block = nblocks - 1

    d2 = d_flat.reshape(rows, _LANE)
    f2 = f_flat.reshape(rows, _LANE)

    kernel = functools.partial(
        _contrastive_loss_kernel, m=float(m), tile_r=tile_r, bpc=bpc)

    def in_map(c, i, n_ref):
        # Dummy trailing blocks of the core split are clamped onto the last real
        # block for the DMA; their contribution is masked to zero in-kernel.
        return (jnp.minimum(c * bpc + i, last_block), 0)

    partials = pl.pallas_call(
        kernel,
        out_shape=jax.ShapeDtypeStruct((_NUM_CORES * _SUBLANE, _LANE), jnp.float32),
        grid_spec=pltpu.PrefetchScalarGridSpec(
            num_scalar_prefetch=1,
            grid=(_NUM_CORES, bpc),
            in_specs=[
                pl.BlockSpec((tile_r, _LANE), in_map),
                pl.BlockSpec((tile_r, _LANE), in_map),
            ],
            out_specs=pl.BlockSpec((_SUBLANE, _LANE), lambda c, i, n_ref: (c, 0)),
        ),
        compiler_params=pltpu.CompilerParams(
            dimension_semantics=("parallel", "arbitrary"),
        ),
    )(jnp.asarray([n], dtype=jnp.int32), d2, f2)

    return jnp.sum(partials) * jnp.float32(1.0 / float(n))


def contrastive_loss_ref(euc_dist, flag, m=2.0):
    # Pure-JAX reference (mirrors the PyTorch forward exactly).
    d = euc_dist.astype(jnp.float32)
    f = flag.astype(jnp.float32)
    return jnp.mean(
        (1.0 - f) * jnp.power(d, 2)
        + f * jnp.power(jnp.clip(m - d, 0.0), 2))


if __name__ == "__main__":
    key = jax.random.PRNGKey(0)
    k1, k2, k3, k4, k5, k6 = jax.random.split(key, 6)

    # Case 1: the module's natural small shape (batch of pair distances).
    # Pallas path forced so the kernel itself is exercised.
    batch = 128
    d_small = jax.random.uniform(k1, (batch,), dtype=jnp.float32) * 3.0
    f_small = jax.random.bernoulli(k2, p=0.5, shape=(batch,)).astype(jnp.float32)
    loss_small = jax.block_until_ready(
        contrastive_loss(d_small, f_small, m=2.0, use_pallas=True))
    ref_small = contrastive_loss_ref(d_small, f_small, m=2.0)
    assert jnp.allclose(loss_small, ref_small, rtol=1e-5, atol=1e-5), (
        loss_small, ref_small)

    # Case 2: 1024-aligned size -> zero-copy path, both cores get real blocks,
    # ragged last block exercises the flat-index mask + dummy clamped block.
    n_big = 1024 * 600   # rows=4800, tile_r=2048, nblocks=3, grid=(2, 2)
    d_big = jax.random.uniform(k3, (n_big,), dtype=jnp.float32) * 3.0
    f_big = jax.random.bernoulli(k4, p=0.5, shape=(n_big,)).astype(jnp.float32)
    loss_big = jax.block_until_ready(
        contrastive_loss(d_big, f_big, m=2.0, use_pallas=True))
    ref_big = contrastive_loss_ref(d_big, f_big, m=2.0)
    assert jnp.allclose(loss_big, ref_big, rtol=1e-4, atol=1e-5), (
        loss_big, ref_big)

    # Case 3: ragged non-1024-multiple size -> wrapper pads to the next 1024
    # boundary; the in-kernel mask keeps padded elements out of the mean.
    n_rag = 70000
    d_rag = jax.random.uniform(k5, (n_rag,), dtype=jnp.float32) * 3.0
    f_rag = jax.random.bernoulli(k6, p=0.5, shape=(n_rag,)).astype(jnp.float32)
    loss_rag = jax.block_until_ready(
        contrastive_loss(d_rag, f_rag, m=2.0, use_pallas=True))
    ref_rag = contrastive_loss_ref(d_rag, f_rag, m=2.0)
    assert jnp.allclose(loss_rag, ref_rag, rtol=1e-4, atol=1e-5), (
        loss_rag, ref_rag)

    # Case 4: auto dispatch for small n uses the fused XLA path and still matches.
    loss_auto = jax.block_until_ready(contrastive_loss(d_small, f_small, m=2.0))
    assert jnp.allclose(loss_auto, ref_small, rtol=1e-5, atol=1e-5), (
        loss_auto, ref_small)

    print("KERNEL_OK")
</pallas_src>

<mosaic_0001>
module attributes {stable_mosaic.version = 11 : i64} {
  func.func @_contrastive_loss_kernel(%arg0: i32, %arg1: i32, %arg2: memref<1xi32, #tpu.memory_space<smem>>, %arg3: memref<8x128xf32, #tpu.memory_space<vmem>>, %arg4: memref<8x128xf32, #tpu.memory_space<vmem>>, %arg5: memref<8x128xf32, #tpu.memory_space<vmem>>) attributes {dimension_semantics = [#tpu.dimension_semantics<parallel>, #tpu.dimension_semantics<arbitrary>], iteration_bounds = array<i64: 2, 1>, scalar_prefetch = 1 : i64, scratch_operands = 0 : i64, tpu.core_type = #tpu.core_type<tc>, window_params = [{transform_indices = @transform_0, window_bounds = array<i64: 8, 128>}, {transform_indices = @transform_1, window_bounds = array<i64: 8, 128>}, {transform_indices = @transform_2, window_bounds = array<i64: 8, 128>}]} {
    %c0_i32 = arith.constant 0 : i32
    %0 = arith.cmpi eq, %arg1, %c0_i32 : i32
    %1 = arith.extui %0 : i1 to i32
    %c0_i32_0 = arith.constant 0 : i32
    %2 = arith.cmpi ne, %1, %c0_i32_0 : i32
    scf.if %2 {
      %cst_9 = arith.constant 0.000000e+00 : f32
      %25 = vector.broadcast %cst_9 : f32 to vector<8x128xf32>
      %c0_10 = arith.constant 0 : index
      %c0_11 = arith.constant 0 : index
      %26 = vector.load %arg5[%c0_10, %c0_11] : memref<8x128xf32, #tpu.memory_space<vmem>>, vector<8x128xf32>
      tpu.vector_store %arg5[%c0_10, %c0_11], %25 {strides = array<i32>} : memref<8x128xf32, #tpu.memory_space<vmem>>, vector<8x128xf32>,
    } else {
    }
    %c0 = arith.constant 0 : index
    %c0_1 = arith.constant 0 : index
    %3 = vector.load %arg3[%c0, %c0_1] : memref<8x128xf32, #tpu.memory_space<vmem>>, vector<8x128xf32>
    %c0_2 = arith.constant 0 : index
    %c0_3 = arith.constant 0 : index
    %4 = vector.load %arg4[%c0_2, %c0_3] : memref<8x128xf32, #tpu.memory_space<vmem>>, vector<8x128xf32>
    %5 = arith.mulf %3, %3 : vector<8x128xf32>
    %cst = arith.constant 2.000000e+00 : f32
    %6 = vector.broadcast %cst : f32 to vector<8x128xf32>
    %7 = arith.subf %6, %3 : vector<8x128xf32>
    %cst_4 = arith.constant 0.000000e+00 : f32
    %8 = vector.broadcast %cst_4 : f32 to vector<8x128xf32>
    %9 = arith.maximumf %7, %8 : vector<8x128xf32>
    %10 = arith.mulf %9, %9 : vector<8x128xf32>
    %11 = arith.subf %10, %5 : vector<8x128xf32>
    %12 = arith.mulf %4, %11 : vector<8x128xf32>
    %13 = arith.addf %5, %12 : vector<8x128xf32>
    %c0_5 = arith.constant 0 : index
    %14 = memref.load %arg2[%c0_5] : memref<1xi32, #tpu.memory_space<smem>>
    %c1_i32 = arith.constant 1 : i32
    %15 = arith.muli %arg0, %c1_i32 : i32
    %16 = arith.addi %15, %arg1 : i32
    %c1024_i32 = arith.constant 1024 : i32
    %17 = arith.muli %16, %c1024_i32 : i32
    %c1024_i32_6 = arith.constant 1024 : i32
    %18 = arith.addi %17, %c1024_i32_6 : i32
    %19 = arith.cmpi sle, %18, %14 : i32
    %20 = arith.extui %19 : i1 to i32
    %c0_i32_7 = arith.constant 0 : i32
    %21 = arith.cmpi ne, %20, %c0_i32_7 : i32
    scf.if %21 {
      %c0_9 = arith.constant 0 : index
      %c0_10 = arith.constant 0 : index
      %25 = vector.load %arg5[%c0_9, %c0_10] : memref<8x128xf32, #tpu.memory_space<vmem>>, vector<8x128xf32>
      %26 = vector.shape_cast %13 : vector<8x128xf32> to vector<1x8x128xf32>
      %cst_11 = arith.constant dense<0.000000e+00> : vector<8x128xf32>
      %27 = vector.multi_reduction <add>, %26, %cst_11 [0] : vector<1x8x128xf32> to vector<8x128xf32>
      %28 = arith.addf %25, %27 : vector<8x128xf32>
      %c0_12 = arith.constant 0 : index
      %c0_13 = arith.constant 0 : index
      %29 = vector.load %arg5[%c0_12, %c0_13] : memref<8x128xf32, #tpu.memory_space<vmem>>, vector<8x128xf32>
      tpu.vector_store %arg5[%c0_12, %c0_13], %28 {strides = array<i32>} : memref<8x128xf32, #tpu.memory_space<vmem>>, vector<8x128xf32>,
    } else {
    }
    %22 = arith.cmpi sgt, %18, %14 : i32
    %23 = arith.extui %22 : i1 to i32
    %c0_i32_8 = arith.constant 0 : i32
    %24 = arith.cmpi ne, %23, %c0_i32_8 : i32
    scf.if %24 {
      %25 = tpu.iota {dimensions = array<i32: 0>} : vector<8x128xi32>
      %26 = tpu.iota {dimensions = array<i32: 1>} : vector<8x128xi32>
      %c128_i32 = arith.constant 128 : i32
      %27 = vector.broadcast %c128_i32 : i32 to vector<8x128xi32>
      %28 = arith.muli %25, %27 : vector<8x128xi32>
      %29 = vector.broadcast %17 : i32 to vector<8x128xi32>
      %30 = arith.addi %29, %28 : vector<8x128xi32>
      %31 = arith.addi %30, %26 : vector<8x128xi32>
      %c0_9 = arith.constant 0 : index
      %c0_10 = arith.constant 0 : index
      %32 = vector.load %arg5[%c0_9, %c0_10] : memref<8x128xf32, #tpu.memory_space<vmem>>, vector<8x128xf32>
      %33 = vector.broadcast %14 : i32 to vector<8x128xi32>
      %34 = arith.cmpi slt, %31, %33 : vector<8x128xi32>
      %cst_11 = arith.constant 0.000000e+00 : f32
      %35 = vector.broadcast %cst_11 : f32 to vector<8x128xf32>
      %36 = arith.select %34, %13, %35 : vector<8x128xi1>, vector<8x128xf32>
      %37 = vector.shape_cast %36 : vector<8x128xf32> to vector<1x8x128xf32>
      %cst_12 = arith.constant dense<0.000000e+00> : vector<8x128xf32>
      %38 = vector.multi_reduction <add>, %37, %cst_12 [0] : vector<1x8x128xf32> to vector<8x128xf32>
      %39 = arith.addf %32, %38 : vector<8x128xf32>
      %c0_13 = arith.constant 0 : index
      %c0_14 = arith.constant 0 : index
      %40 = vector.load %arg5[%c0_13, %c0_14] : memref<8x128xf32, #tpu.memory_space<vmem>>, vector<8x128xf32>
      tpu.vector_store %arg5[%c0_13, %c0_14], %39 {strides = array<i32>} : memref<8x128xf32, #tpu.memory_space<vmem>>, vector<8x128xf32>,
    } else {
    }
    return
  }
  func.func @transform_0(%arg0: i32, %arg1: i32, %arg2: memref<1xi32, #tpu.memory_space<smem>>) -> (i32, i32) {
    %c1_i32 = arith.constant 1 : i32
    %0 = arith.muli %arg0, %c1_i32 : i32
    %1 = arith.addi %0, %arg1 : i32
    %c0_i32 = arith.constant 0 : i32
    %2 = arith.minsi %1, %c0_i32 : i32
    %c0_i32_0 = arith.constant 0 : i32
    %c0_i32_1 = arith.constant 0 : i32
    return %2, %c0_i32_0 : i32, i32
  }
  func.func @transform_1(%arg0: i32, %arg1: i32, %arg2: memref<1xi32, #tpu.memory_space<smem>>) -> (i32, i32) {
    %c1_i32 = arith.constant 1 : i32
    %0 = arith.muli %arg0, %c1_i32 : i32
    %1 = arith.addi %0, %arg1 : i32
    %c0_i32 = arith.constant 0 : i32
    %2 = arith.minsi %1, %c0_i32 : i32
    %c0_i32_0 = arith.constant 0 : i32
    %c0_i32_1 = arith.constant 0 : i32
    return %2, %c0_i32_0 : i32, i32
  }
  func.func @transform_2(%arg0: i32, %arg1: i32, %arg2: memref<1xi32, #tpu.memory_space<smem>>) -> (i32, i32) {
    %c0_i32 = arith.constant 0 : i32
    %c0_i32_0 = arith.constant 0 : i32
    return %arg0, %c0_i32 : i32, i32
  }
}

</mosaic_0001>

<llo_original>
// kernel: tpu_custom_call.1
$region0: #{tpu_custom_call.1}
  #allocation0 [shape = 'u32[]', space=smem, size = 0x4, offset = 0x4, fixed_abs, tag = 'smem constant byte address 0x4 - core index']
  #allocation1 [shape = 'u32[144,128]{1,0:T(1,128)}', space=vmem, size = 0x12000, scoped, tag = 'internal scratch']
  #allocation2 [shape = 's32[1]{0}', space=sflag, size = 0x4, scoped, tag = 'scoped memory for tpu_custom_call.1']
  #allocation3 [shape = 's32[1]{0:T(128)S(6)}', space=smem, size = 0x200, scoped, tag = 'prefetched SMEM operand 0']
  %s0 = inlined_call_operand.<no memory space> [shape: s32[1], index: 0, kind: input, shape index: {}]
  %s1 = inlined_call_operand.hbm [shape: f32[8,128], index: 1, kind: input, shape index: {}]
  %s2 = inlined_call_operand.hbm [shape: f32[8,128], index: 2, kind: input, shape index: {}]
  %s3 = inlined_call_operand.hbm [shape: f32[16,128], index: 3, kind: output, shape index: {}]
  %s4 = sld [smem:[#allocation0]]
  $region61: #{tpu_custom_call.1} parent=0
    _
  %s6 = ssub.s32 1, %s4
  %s7 = scalar_select 0, %s6, %s4
  %8 = sst [smem:[#allocation3]] %s0
  $region1: #{tpu_custom_call.1} parent=0
    #allocation4 [shape = 'u8[8192]{0}', space=vmem, size = 0x2000, scoped, tag = 'input window, operand 1']
    #allocation5 [shape = 's32[2]{0}', space=sflag, size = 0x8, scoped, tag = 'scoped memory for tpu_custom_call.1']
    #allocation6 [shape = 's32[2]{0}', space=sflag, size = 0x8, scoped, tag = 'scoped memory for tpu_custom_call.1']
    #allocation7 [shape = 'u8[8192]{0}', space=vmem, size = 0x2000, scoped, tag = 'input window, operand 2']
    #allocation8 [shape = 's32[2]{0}', space=sflag, size = 0x8, scoped, tag = 'scoped memory for tpu_custom_call.1']
    #allocation9 [shape = 'u8[8192]{0}', space=vmem, size = 0x2000, scoped, tag = 'output window, operand 0']
    %9 = vsyncpa [#allocation5], 0
    %s10 = scalar_lea.sflag [#allocation5], 1
    %11 = vsyncpa %s10, 0
    %12 = vsyncpa [#allocation8], 0
    %s13 = scalar_lea.sflag [#allocation8], 1
    %14 = vsyncpa %s13, 0
    %15 = vsyncpa [#allocation6], 0
    %s16 = scalar_lea.sflag [#allocation6], 1
    %17 = vsyncpa %s16, 0
    loop: start=0, step=1, limit=4
    $region2: #{tpu_custom_call.1} parent=1 // loop_pre_header
      _
    $region3: #{tpu_custom_call.1} parent=1 // loop_header
      %s19 = sphi 0, %s23
      %p20 = scmp.ge.s32.totalorder %s19, 4
      %s26 = sphi 0, %s38
      %s27 = sphi 0, %s34
      %s28 = sphi 0, %s26
      %s29 = sphi 0, %s27
      %s30 = sphi 0, %s28
      %s31 = sphi 0, %s29
      %s47 = sphi 0, %s49
      %s50 = sphi 0, %s47
      %s51 = sphi 0, %s50
      %s67 = sphi 0, %s51
      %s79 = sphi 0, %s81
      %s82 = sphi 0, %s79
      %s83 = sphi 0, %s82
      %s99 = sphi 0, %s83
      %s105 = sphi 0, %s107
      %s108 = sphi 0, %s105
      %s109 = sphi 0, %s108
      %s125 = sphi 0, %s109
    $region4: #{tpu_custom_call.1} parent=1 // loop_header_branch
      %22 = sbr.rel (%p20) target = $region8
    $region5: #{tpu_custom_call.1} parent=1 // loop_body
      %s24 = ssub.s32 %s19, 1
      %s25 = ssub.s32 %s19, 2
      %s32 = sadd.s32 1, %s27
      %p33 = scmp.ge.s32.totalorder %s32, 1
      %s34 = scalar_select %p33, 0, %s32
      %s35 = sadd.s32 1, %s26
      %s36 = scalar_select %p33, %s35, %s26
      %p37 = scmp.ge.s32.totalorder %s36, 2
      %s38 = scalar_select %p37, 0, %s36
      %s39 = sadd.s32 %s26, %s27
      %p40 = scmp.lt.s32.totalorder %s39, 0
      %s41 = scalar_select %p40, %s39, 0
      %s42 = sadd.s32 %s38, %s34
      %p43 = scmp.lt.s32.totalorder %s42, 0
      %s44 = scalar_select %p43, %s42, 0
      %s45 = ssub.s32 %s41, %s44
      %p46 = scmp.eq.s32.totalorder %s45, 0
      %s48 = sadd.s32 %s47, 1
      %s49 = scalar_select %p46, %s47, %s48
      %p52 = pneg %p46
      %p53 = scmp.eq.s32.totalorder %s19, 1
      %p54 = por %p52, %p53
      %p55 = scmp.ne.s32.totalorder %s47, %s50
      %p56 = scmp.eq.s32.totalorder %s19, 0
      %p57 = por %p55, %p56
      %p58 = scmp.ne.s32.totalorder %s47, %s50
      %p59 = scmp.eq.s32.totalorder %s24, 1
      %p60 = por %p58, %p59
      %p61 = scmp.ne.s32.totalorder %s50, %s51
      %p62 = scmp.eq.s32.totalorder %s24, 0
      %p63 = por %p61, %p62
      %p64 = scmp.ne.s32.totalorder %s50, %s51
      %p65 = scmp.eq.s32.totalorder %s25, 1
      %p66 = por %p64, %p65
      %p68 = scmp.ne.s32.totalorder %s51, %s67
      %p69 = scmp.eq.s32.totalorder %s25, 0
      %p70 = por %p68, %p69
      %s71 = sadd.s32 %s26, %s27
      %p72 = scmp.lt.s32.totalorder %s71, 0
      %s73 = scalar_select %p72, %s71, 0
      %s74 = sadd.s32 %s38, %s34
      %p75 = scmp.lt.s32.totalorder %s74, 0
      %s76 = scalar_select %p75, %s74, 0
      %s77 = ssub.s32 %s73, %s76
      %p78 = scmp.eq.s32.totalorder %s77, 0
      %s80 = sadd.s32 %s79, 1
      %s81 = scalar_select %p78, %s79, %s80
      %p84 = pneg %p78
      %p85 = scmp.eq.s32.totalorder %s19, 1
      %p86 = por %p84, %p85
      %p87 = scmp.ne.s32.totalorder %s79, %s82
      %p88 = scmp.eq.s32.totalorder %s19, 0
      %p89 = por %p87, %p88
      %p90 = scmp.ne.s32.totalorder %s79, %s82
      %p91 = scmp.eq.s32.totalorder %s24, 1
      %p92 = por %p90, %p91
      %p93 = scmp.ne.s32.totalorder %s82, %s83
      %p94 = scmp.eq.s32.totalorder %s24, 0
      %p95 = por %p93, %p94
      %p96 = scmp.ne.s32.totalorder %s82, %s83
      %p97 = scmp.eq.s32.totalorder %s25, 1
      %p98 = por %p96, %p97
      %p100 = scmp.ne.s32.totalorder %s83, %s99
      %p101 = scmp.eq.s32.totalorder %s25, 0
      %p102 = por %p100, %p101
      %s103 = ssub.s32 %s26, %s38
      %p104 = scmp.eq.s32.totalorder %s103, 0
      %s106 = sadd.s32 %s105, 1
      %s107 = scalar_select %p104, %s105, %s106
      %p110 = pneg %p104
      %p111 = scmp.eq.s32.totalorder %s19, 1
      %p112 = por %p110, %p111
      %p113 = scmp.ne.s32.totalorder %s105, %s108
      %p114 = scmp.eq.s32.totalorder %s19, 0
      %p115 = por %p113, %p114
      %p116 = scmp.ne.s32.totalorder %s105, %s108
      %p117 = scmp.eq.s32.totalorder %s24, 1
      %p118 = por %p116, %p117
      %p119 = scmp.ne.s32.totalorder %s108, %s109
      %p120 = scmp.eq.s32.totalorder %s24, 0
      %p121 = por %p119, %p120
      %p122 = scmp.ne.s32.totalorder %s108, %s109
      %p123 = scmp.eq.s32.totalorder %s25, 1
      %p124 = por %p122, %p123
      %p126 = scmp.ne.s32.totalorder %s109, %s125
      %p127 = scmp.eq.s32.totalorder %s25, 0
      %p128 = por %p126, %p127
      %p129 = scmp.le.s32.totalorder 1, %s19
      %p130 = scmp.lt.s32.totalorder %s19, 3
      %p131 = pnand %p129, %p130
      %p132 = pneg %p131
      // Predicated region
      $region9: #{tpu_custom_call.1} parent=5 // pred_check
        _
      $region10: #{tpu_custom_call.1} parent=5 // pred_check_branch
        %134 = sbr.rel (%p131) target = $region12
      $region11: #{tpu_custom_call.1} parent=5 // pred_region
        %s135 = ssub.s32 %s19, 1
      $region12: #{tpu_custom_call.1} parent=5 // pred_fallthru
        _
      %p136 = scmp.lt.s32.totalorder %s19, 2
      // Predicated region
      $region13: #{tpu_custom_call.1} parent=5 // pred_check
        %p137 = pneg %p136
      $region14: #{tpu_custom_call.1} parent=5 // pred_check_branch
        %139 = sbr.rel (%p137) target = $region16
      $region15: #{tpu_custom_call.1} parent=5 // pred_region
        // Predicated region
        $region17: #{tpu_custom_call.1} parent=15 // pred_check
          %p140 = pneg %p57
        $region18: #{tpu_custom_call.1} parent=15 // pred_check_branch
          %142 = sbr.rel (%p140) target = $region20
        $region19: #{tpu_custom_call.1} parent=15 // pred_region
          %s143 = sand.u32 %s47, 1
          %s144 = scalar_lea.sflag [#allocation5], %s143
          %s145 = sand.u32 %s47, 1
          %s146 = smul.addr %s145, 8
          %s147 = scalar_lea.vmem [#allocation4], %s146
          %s148 = sadd.s32 %s26, %s27
          %p149 = scmp.lt.s32.totalorder %s148, 0
          %s150 = scalar_select %p149, %s148, 0
          %s152 = ssub.s32 128, 128
          %153 = vsyncadd %s144, %s152
          %s154 = smul.addr %s150, 128
          %s155 = scalar_lea.hbm %s1, %s154
          %s157 = sshll.u32 %s147, 4
          %s158 = int_to_ptr.vmem [resolvable:$true] %s157
          %160 = dma.hbm_to_vmem [thread:$0]  %s155, 128, %s158, %s144
        $region20: #{tpu_custom_call.1} parent=15 // pred_fallthru
          _
        // Predicated region
        $region21: #{tpu_custom_call.1} parent=15 // pred_check
          %p161 = pneg %p89
        $region22: #{tpu_custom_call.1} parent=15 // pred_check_branch
          %163 = sbr.rel (%p161) target = $region24
        $region23: #{tpu_custom_call.1} parent=15 // pred_region
          %s164 = sand.u32 %s79, 1
          %s165 = scalar_lea.sflag [#allocation8], %s164
          %s166 = sand.u32 %s79, 1
          %s167 = smul.addr %s166, 8
          %s168 = scalar_lea.vmem [#allocation7], %s167
          %s169 = sadd.s32 %s26, %s27
          %p170 = scmp.lt.s32.totalorder %s169, 0
          %s171 = scalar_select %p170, %s169, 0
          %s173 = ssub.s32 128, 128
          %174 = vsyncadd %s165, %s173
          %s175 = smul.addr %s171, 128
          %s176 = scalar_lea.hbm %s2, %s175
          %s178 = sshll.u32 %s168, 4
          %s179 = int_to_ptr.vmem [resolvable:$true] %s178
          %181 = dma.hbm_to_vmem [thread:$0]  %s176, 128, %s179, %s165
        $region24: #{tpu_custom_call.1} parent=15 // pred_fallthru
          _
      $region16: #{tpu_custom_call.1} parent=5 // pred_fallthru
        _
      %p182 = scmp.le.s32.totalorder 1, %s19
      %p183 = scmp.lt.s32.totalorder %s19, 3
      %p184 = pnand %p182, %p183
      %p185 = pneg %p184
      // Predicated region
      $region25: #{tpu_custom_call.1} parent=5 // pred_check
        _
      $region26: #{tpu_custom_call.1} parent=5 // pred_check_branch
        %187 = sbr.rel (%p184) target = $region28
      $region27: #{tpu_custom_call.1} parent=5 // pred_region
        %s188 = ssub.s32 %s19, 1
        %s189 = sand.u32 %s50, 1
        %s190 = scalar_lea.sflag [#allocation5], %s189
        %s191 = sand.u32 %s50, 1
        %s192 = smul.addr %s191, 8
        %s193 = scalar_lea.vmem [#allocation4], %s192
        // Predicated region
        $region29: #{tpu_custom_call.1} parent=27 // pred_check
          %p194 = pneg %p63
        $region30: #{tpu_custom_call.1} parent=27 // pred_check_branch
          %196 = sbr.rel (%p194) target = $region32
        $region31: #{tpu_custom_call.1} parent=27 // pred_region
          %197 = dma.done %s190, 128
        $region32: #{tpu_custom_call.1} parent=27 // pred_fallthru
          _
        %s198 = sand.u32 %s82, 1
        %s199 = scalar_lea.sflag [#allocation8], %s198
        %s200 = sand.u32 %s82, 1
        %s201 = smul.addr %s200, 8
        %s202 = scalar_lea.vmem [#allocation7], %s201
        // Predicated region
        $region33: #{tpu_custom_call.1} parent=27 // pred_check
          %p203 = pneg %p95
        $region34: #{tpu_custom_call.1} parent=27 // pred_check_branch
          %205 = sbr.rel (%p203) target = $region36
        $region35: #{tpu_custom_call.1} parent=27 // pred_region
          %206 = dma.done %s199, 128
        $region36: #{tpu_custom_call.1} parent=27 // pred_fallthru
          _
        %s207 = sand.u32 %s50, 1
        %s208 = scalar_lea.sflag [#allocation5], %s207
        %s209 = sand.u32 %s50, 1
        %s210 = smul.addr %s209, 8
        %s211 = scalar_lea.vmem [#allocation4], %s210
        %p212 = pneg %p63
        %p213 = pneg %p60
        %s214 = sand.u32 %s82, 1
        %s215 = scalar_lea.sflag [#allocation8], %s214
        %s216 = sand.u32 %s82, 1
        %s217 = smul.addr %s216, 8
        %s218 = scalar_lea.vmem [#allocation7], %s217
        %p219 = pneg %p95
        %p220 = pneg %p92
        %p221 = pneg %p121
        %p222 = pneg %p118
        %s223 = sand.u32 %s108, 1
        %s224 = scalar_lea.sflag [#allocation6], %s223
        %s225 = sand.u32 %s108, 1
        %s226 = smul.addr %s225, 8
        %s227 = scalar_lea.vmem [#allocation9], %s226
        %s228 = sadd.s32 %s28, %s29
        %p229 = scmp.lt.s32.totalorder %s228, 0
        %s230 = scalar_select %p229, %s228, 0
        %s231 = sadd.s32 %s28, %s29
        %p232 = scmp.lt.s32.totalorder %s231, 0
        %s233 = scalar_select %p232, %s231, 0
        %p234 = scmp.eq.s32.totalorder %s29, 0
        // Predicated region
        $region37: #{tpu_custom_call.1} parent=27 // pred_check
          %p235 = pneg %p234
        $region38: #{tpu_custom_call.1} parent=27 // pred_check_branch
          %237 = sbr.rel (%p235) target = $region40
        $region39: #{tpu_custom_call.1} parent=27 // pred_region
          %238 = vst [vmem:[%s227] sm:$0xff] 0.0
        $region40: #{tpu_custom_call.1} parent=27 // pred_fallthru
          _
        %v239 = vld [vmem:[%s193] sm:$0xff]
        %v240 = vld [vmem:[%s202] sm:$0xff]
        %v241 = vmul.f32 %v239, %v239
        %v242 = vsub.f32 2.0, %v239
        %v243 = vmax.f32 %v242, 0.0
        %v244 = vmul.f32 %v243, %v243
        %v245 = vsub.f32 %v244, %v241
        %v246 = vmul.f32 %v240, %v245
        %v247 = vadd.f32 %v241, %v246
        %s248 = sld [smem:[#allocation3]]
        %s249 = sadd.s32 %s28, %s29
        %s250 = smul.u32 %s249, 1024
        %s251 = sadd.s32 %s250, 1024
        %p252 = scmp.le.s32.totalorder %s251, %s248
        // Predicated region
        $region41: #{tpu_custom_call.1} parent=27 // pred_check
          %p253 = pneg %p252
        $region42: #{tpu_custom_call.1} parent=27 // pred_check_branch
          %255 = sbr.rel (%p253) target = $region44
        $region43: #{tpu_custom_call.1} parent=27 // pred_region
          %v256 = vld [vmem:[%s227] sm:$0xff]
          %v257 = vadd.f32 %v247, 0.0
          %v258 = vadd.f32 %v256, %v257
          %259 = vst [vmem:[%s227] sm:$0xff] %v258
        $region44: #{tpu_custom_call.1} parent=27 // pred_fallthru
          _
        %p260 = scmp.gt.s32.totalorder %s251, %s248
        // Predicated region
        $region45: #{tpu_custom_call.1} parent=27 // pred_check
          %p261 = pneg %p260
        $region46: #{tpu_custom_call.1} parent=27 // pred_check_branch
          %263 = sbr.rel (%p261) target = $region48
        $region47: #{tpu_custom_call.1} parent=27 // pred_region
          %v264 = vlaneseq
          %v265 = vshrl.u32 %v264, 7
          %v266 = vlaneseq
          %v267 = vand.u32 %v266, 127
          %v268 = vmul.u32 %v265, 128
          %v269 = vstv %s250
          %v270 = vadd.s32 %v269, %v268
          %v271 = vadd.s32 %v270, %v267
          %v272 = vld [vmem:[%s227] sm:$0xff]
          %v273 = vstv %s248
          %vm274 = vcmp.lt.s32.totalorder %v271, %v273
          %v275 = vsel %vm274, %v247, 0.0
          %v276 = vadd.f32 %v275, 0.0
          %v277 = vadd.f32 %v272, %v276
          %278 = vst [vmem:[%s227] sm:$0xff] %v277
        $region48: #{tpu_custom_call.1} parent=27 // pred_fallthru
          _
        %s279 = sand.u32 %s108, 1
        %s280 = scalar_lea.sflag [#allocation6], %s279
        %s281 = sand.u32 %s108, 1
        %s282 = smul.addr %s281, 8
        %s283 = scalar_lea.vmem [#allocation9], %s282
        // Predicated region
        $region49: #{tpu_custom_call.1} parent=27 // pred_check
          %p284 = pneg %p118
        $region50: #{tpu_custom_call.1} parent=27 // pred_check_branch
          %286 = sbr.rel (%p284) target = $region52
        $region51: #{tpu_custom_call.1} parent=27 // pred_region
          %s288 = ssub.s32 128, 128
          %289 = vsyncadd %s280, %s288
          %s290 = smul.addr %s28, 128
          %s291 = scalar_lea.hbm %s3, %s290
          %s293 = sshll.u32 %s283, 4
          %s294 = int_to_ptr.vmem [resolvable:$true] %s293
          %296 = dma.vmem_to_hbm [thread:$0]  %s294, 128, %s291, %s280
        $region52: #{tpu_custom_call.1} parent=27 // pred_fallthru
          _
      $region28: #{tpu_custom_call.1} parent=5 // pred_fallthru
        _
      %p297 = scmp.le.s32.totalorder 2, %s19
      // Predicated region
      $region53: #{tpu_custom_call.1} parent=5 // pred_check
        %p298 = pneg %p297
      $region54: #{tpu_custom_call.1} parent=5 // pred_check_branch
        %300 = sbr.rel (%p298) target = $region56
      $region55: #{tpu_custom_call.1} parent=5 // pred_region
        %s301 = ssub.s32 %s19, 2
        // Predicated region
        $region57: #{tpu_custom_call.1} parent=55 // pred_check
          %p302 = pneg %p124
        $region58: #{tpu_custom_call.1} parent=55 // pred_check_branch
          %304 = sbr.rel (%p302) target = $region60
        $region59: #{tpu_custom_call.1} parent=55 // pred_region
          %s305 = sand.u32 %s109, 1
          %s306 = scalar_lea.sflag [#allocation6], %s305
          %s307 = sand.u32 %s109, 1
          %s308 = smul.addr %s307, 8
          %s309 = scalar_lea.vmem [#allocation9], %s308
          %310 = dma.done %s306, 128
        $region60: #{tpu_custom_call.1} parent=55 // pred_fallthru
          _
      $region56: #{tpu_custom_call.1} parent=5 // pred_fallthru
        _
    $region6: #{tpu_custom_call.1} parent=1 // loop_footer
      %s23 = sadd.s32 1, %s19
    $region7: #{tpu_custom_call.1} parent=1 // loop_footer_branch
      %18 = sbr.rel target = $region3
    $region8: #{tpu_custom_call.1} parent=1 // loop_exit
      _
    %311 = vsyncpa [#allocation5], 1
    %s312 = scalar_lea.sflag [#allocation5], 1
    %313 = vsyncpa %s312, 1
    %314 = vsyncpa [#allocation8], 1
    %s315 = scalar_lea.sflag [#allocation8], 1
    %316 = vsyncpa %s315, 1
    %317 = vsyncpa [#allocation6], 1
    %s318 = scalar_lea.sflag [#allocation6], 1
    %319 = vsyncpa %s318, 1

</llo_original>
